<compile_context>
chip_gen: v7x
topology: tpu7x:2x2x1
jax: 0.10.0
libtpu: 0.0.40
codegen_flags: <defaults>
</compile_context>

<pallas_src>
import functools

import jax
import jax.numpy as jnp
from jax.experimental import pallas as pl
from jax.experimental.pallas import tpu as pltpu


def _apply_act(y, act_func):
    # y is f32; keep elementwise math in f32 (matches PyTorch).
    if act_func == 'sigmoid':
        return jax.nn.sigmoid(y)
    if act_func == 'tanh':
        return jnp.tanh(y)
    if act_func == 'relu':
        return jnp.maximum(y, 0.0)
    if act_func == 'leakyrelu':
        return jnp.where(y >= 0.0, y, 0.01 * y)
    if act_func == 'elu':
        # exp(y)-1 instead of expm1: guaranteed Mosaic lowering; ~1e-7 f32
        # error near zero, far below tolerance.
        return jnp.where(y > 0.0, y, jnp.exp(y) - 1.0)
    if act_func == 'softplus':
        return jnp.maximum(y, 0.0) + jnp.log(1.0 + jnp.exp(-jnp.abs(y)))
    if act_func == 'softsign':
        return y / (1.0 + jnp.abs(y))
    raise ValueError(f'ERROR: activation function "{act_func}" is not defined.')


def _make_elementwise_kernel(b_tile, act_func):
    def kernel(x_ref, w_ref, b_ref, o_ref):
        # x_ref: (b_tile, Kt*c_in, T_out*V_pad)   w_ref: (c_out, Kt*c_in)
        # b_ref: (c_out, 1)                        o_ref: (b_tile, c_out, T_out*V_pad)
        w = w_ref[...]
        bias = b_ref[...].astype(jnp.float32)
        for b in range(b_tile):                      # static unroll over batch tile
            y = jax.lax.dot_general(
                w, x_ref[b],
                dimension_numbers=(((1,), (0,)), ((), ())),
                preferred_element_type=jnp.float32)  # (c_out, T_out*V_pad)
            y = _apply_act(y + bias, act_func)
            o_ref[b] = y.astype(o_ref.dtype)
    return kernel


def _make_linear_kernel(b_tile, T_out, V_pad):
    def kernel(x_ref, w_ref, b_ref, wt_ref, bl_ref, o_ref):
        # wt_ref: (V_pad, V_pad) f32 zero-padded W^T    bl_ref: (1, V_pad) f32
        w = w_ref[...]
        bias = b_ref[...].astype(jnp.float32)
        wt = wt_ref[...]
        bl = bl_ref[...]
        for b in range(b_tile):
            y = jax.lax.dot_general(
                w, x_ref[b],
                dimension_numbers=(((1,), (0,)), ((), ())),
                preferred_element_type=jnp.float32) + bias  # (c_out, T_out*V_pad)
            # nn.Linear over vertices, one lane-aligned (c_out, V_pad) matmul
            # per temporal slice.  No kron(I_Tout, W^T) block-diagonal weight.
            zs = []
            for t in range(T_out):
                y_t = y[:, t * V_pad:(t + 1) * V_pad]        # lane-aligned slice
                z_t = jax.lax.dot_general(
                    y_t, wt,
                    dimension_numbers=(((1,), (0,)), ((), ())),
                    preferred_element_type=jnp.float32) + bl
                zs.append(z_t)
            z = zs[0] if T_out == 1 else jnp.concatenate(zs, axis=1)
            o_ref[b] = z.astype(o_ref.dtype)
    return kernel


def last_temporal_conv_layer(x, conv_w, conv_b, lin_w, lin_b, *, Kt, act_func):
    """x: (B, c_in, T, n_vertex) NCHW; returns (B, c_out, T-Kt+1, n_vertex)."""
    B, c_in, T, V = x.shape
    c_out = conv_w.shape[0]
    T_out = T - Kt + 1
    V_pad = ((V + 127) // 128) * 128
    N = T_out * V_pad
    K = Kt * c_in

    # Zero-pad vertices to a 128-lane multiple -> lane-dense, unmasked stores.
    if V_pad != V:
        x = jnp.pad(x, ((0, 0), (0, 0), (0, 0), (0, V_pad - V)))

    # im2col over the Kt temporal taps -> one K = Kt*c_in MXU contraction.
    taps = [x[:, :, kt:kt + T_out, :] for kt in range(Kt)]
    x_col = jnp.concatenate(taps, axis=1).reshape(B, K, N)

    # Conv weight OIHW (c_out, c_in, Kt, 1) -> (c_out, Kt*c_in), row order
    # matching x_col (tap-major, channel-minor).
    w_mat = jnp.transpose(conv_w[:, :, :, 0], (0, 2, 1)).reshape(c_out, K)
    w_mat = w_mat.astype(x.dtype)
    b2 = conv_b.reshape(c_out, 1)

    # Batch tiling: target a ~2 MiB per-step input slab (modest unroll cap),
    # but keep at least 2 grid steps when B >= 2 so both v7x TCs get work.
    itemsize = jnp.dtype(x.dtype).itemsize
    per_batch_in = K * N * itemsize
    b_tile = max(1, min(int((2 * 1024 * 1024) // per_batch_in), 16))
    if B >= 2:
        b_tile = min(b_tile, pl.cdiv(B, 2))
    b_tile = min(b_tile, B)
    B_pad = pl.cdiv(B, b_tile) * b_tile
    if B_pad != B:
        x_col = jnp.pad(x_col, ((0, B_pad - B), (0, 0), (0, 0)))

    grid = (B_pad // b_tile,)
    x_spec = pl.BlockSpec((b_tile, K, N), lambda g: (g, 0, 0))
    w_spec = pl.BlockSpec((c_out, K), lambda g: (0, 0))
    b_spec = pl.BlockSpec((c_out, 1), lambda g: (0, 0))
    out_spec = pl.BlockSpec((b_tile, c_out, N), lambda g: (g, 0, 0))
    out_shape = jax.ShapeDtypeStruct((B_pad, c_out, N), x.dtype)
    cparams = pltpu.CompilerParams(
        dimension_semantics=("parallel",),
        vmem_limit_bytes=32 * 1024 * 1024)

    if act_func == 'linear':
        # Zero-padded W^T / bias: padded-vertex garbage (== conv bias) hits
        # zero rows of wt_pad, so it contributes nothing to real outputs.
        wt_pad = jnp.zeros((V_pad, V_pad), jnp.float32).at[:V, :V].set(
            lin_w.T.astype(jnp.float32))
        bl_pad = jnp.zeros((1, V_pad), jnp.float32).at[0, :V].set(
            lin_b.astype(jnp.float32))
        out = pl.pallas_call(
            _make_linear_kernel(b_tile, T_out, V_pad),
            out_shape=out_shape,
            grid=grid,
            in_specs=[x_spec, w_spec, b_spec,
                      pl.BlockSpec((V_pad, V_pad), lambda g: (0, 0)),
                      pl.BlockSpec((1, V_pad), lambda g: (0, 0))],
            out_specs=out_spec,
            compiler_params=cparams,
        )(x_col, w_mat, b2, wt_pad, bl_pad)
    else:
        out = pl.pallas_call(
            _make_elementwise_kernel(b_tile, act_func),
            out_shape=out_shape,
            grid=grid,
            in_specs=[x_spec, w_spec, b_spec],
            out_specs=out_spec,
            compiler_params=cparams,
        )(x_col, w_mat, b2)

    # Drop batch / vertex padding; free reshape back to NCHW.
    return out[:B].reshape(B, c_out, T_out, V_pad)[:, :, :, :V]


def reference(x, conv_w, conv_b, lin_w, lin_b, *, Kt, act_func):
    """Plain-JAX reference matching the PyTorch forward."""
    y = jax.lax.conv_general_dilated(
        x, conv_w, window_strides=(1, 1), padding='VALID',
        dimension_numbers=('NCHW', 'OIHW', 'NCHW'))
    y = y + conv_b[None, :, None, None]
    if act_func == 'linear':
        return jnp.einsum('bctv,nv->bctn', y, lin_w) + lin_b
    return _apply_act(y, act_func)


if __name__ == "__main__":
    # Small, STGCN-like shapes.
    B, c_in, c_out, Kt, T, n_vertex = 2, 4, 8, 3, 8, 16

    key = jax.random.PRNGKey(0)
    kx, kw, kb, kwl, kbl = jax.random.split(key, 5)
    x = jax.random.normal(kx, (B, c_in, T, n_vertex), jnp.float32)
    conv_w = jax.random.normal(kw, (c_out, c_in, Kt, 1), jnp.float32) * 0.2
    conv_b = jax.random.normal(kb, (c_out,), jnp.float32) * 0.1
    lin_w = jax.random.normal(kwl, (n_vertex, n_vertex), jnp.float32) * 0.2
    lin_b = jax.random.normal(kbl, (n_vertex,), jnp.float32) * 0.1

    ok = True
    for act in ("sigmoid", "tanh", "relu", "leakyrelu", "elu",
                "softplus", "softsign", "linear"):
        fn = jax.jit(functools.partial(
            last_temporal_conv_layer, Kt=Kt, act_func=act))
        out = jax.block_until_ready(fn(x, conv_w, conv_b, lin_w, lin_b))
        ref = jax.block_until_ready(
            reference(x, conv_w, conv_b, lin_w, lin_b, Kt=Kt, act_func=act))
        assert out.shape == (B, c_out, T - Kt + 1, n_vertex)
        if not jnp.allclose(out, ref, atol=1e-3, rtol=1e-3):
            ok = False
            print(f"mismatch for act={act}: max err "
                  f"{float(jnp.max(jnp.abs(out - ref)))}")

    if ok:
        print("KERNEL_OK")
</pallas_src>

<mosaic_0001>
module attributes {stable_mosaic.version = 11 : i64} {
  func.func @kernel(%arg0: i32, %arg1: memref<1x12x768xf32, #tpu.memory_space<vmem>>, %arg2: memref<8x12xf32, #tpu.memory_space<vmem>>, %arg3: memref<8x1xf32, #tpu.memory_space<vmem>>, %arg4: memref<1x8x768xf32, #tpu.memory_space<vmem>>) attributes {dimension_semantics = [#tpu.dimension_semantics<parallel>], iteration_bounds = array<i64: 2>, scalar_prefetch = 0 : i64, scratch_operands = 0 : i64, tpu.core_type = #tpu.core_type<tc>, window_params = [{transform_indices = @transform_0, window_bounds = array<i64: 1, 12, 768>}, {pipeline_mode = #tpu.pipeline_mode<synchronous>, transform_indices = @transform_1, window_bounds = array<i64: 8, 12>}, {pipeline_mode = #tpu.pipeline_mode<synchronous>, transform_indices = @transform_2, window_bounds = array<i64: 8, 1>}, {transform_indices = @transform_3, window_bounds = array<i64: 1, 8, 768>}]} {
    %c0 = arith.constant 0 : index
    %c0_0 = arith.constant 0 : index
    %0 = vector.load %arg2[%c0, %c0_0] : memref<8x12xf32, #tpu.memory_space<vmem>>, vector<8x12xf32>
    %c0_1 = arith.constant 0 : index
    %c0_2 = arith.constant 0 : index
    %1 = vector.load %arg3[%c0_1, %c0_2] : memref<8x1xf32, #tpu.memory_space<vmem>>, vector<8x1xf32>
    %c0_3 = arith.constant 0 : index
    %c0_4 = arith.constant 0 : index
    %c0_5 = arith.constant 0 : index
    %2 = vector.load %arg1[%c0_3, %c0_4, %c0_5] : memref<1x12x768xf32, #tpu.memory_space<vmem>>, vector<1x12x768xf32>
    %3 = vector.shape_cast %2 : vector<1x12x768xf32> to vector<12x768xf32>
    %cst = arith.constant dense<0.000000e+00> : vector<8x768xf32>
    %4 = tpu.matmul %0, %3, %cst {dimension_numbers = #tpu.dot_dimension_numbers<[1], [0], [0], [1], [0, 0, 1, 1], [], []>} : vector<8x12xf32>, vector<12x768xf32>, vector<8x768xf32> -> vector<8x768xf32>
    %5 = vector.broadcast %1 : vector<8x1xf32> to vector<8x768xf32>
    %6 = arith.addf %4, %5 : vector<8x768xf32>
    %7 = arith.negf %6 : vector<8x768xf32>
    %8 = math.exp %7 : vector<8x768xf32>
    %cst_6 = arith.constant 1.000000e+00 : f32
    %9 = vector.broadcast %cst_6 : f32 to vector<8x768xf32>
    %10 = arith.addf %9, %8 : vector<8x768xf32>
    %11 = arith.divf %9, %10 : vector<8x768xf32>
    %c0_7 = arith.constant 0 : index
    %c0_8 = arith.constant 0 : index
    %c0_9 = arith.constant 0 : index
    %12 = vector.load %arg4[%c0_7, %c0_8, %c0_9] : memref<1x8x768xf32, #tpu.memory_space<vmem>>, vector<1x8x768xf32>
    %13 = vector.shape_cast %12 : vector<1x8x768xf32> to vector<8x768xf32>
    %14 = vector.shape_cast %11 : vector<8x768xf32> to vector<1x8x768xf32>
    tpu.vector_store %arg4[%c0_7, %c0_8, %c0_9], %14 {strides = array<i32>} : memref<1x8x768xf32, #tpu.memory_space<vmem>>, vector<1x8x768xf32>,
    return
  }
  func.func @transform_0(%arg0: i32) -> (i32, i32, i32) {
    %c0_i32 = arith.constant 0 : i32
    %c0_i32_0 = arith.constant 0 : i32
    %c0_i32_1 = arith.constant 0 : i32
    return %arg0, %c0_i32, %c0_i32_0 : i32, i32, i32
  }
  func.func @transform_1(%arg0: i32) -> (i32, i32) {
    %c0_i32 = arith.constant 0 : i32
    %c0_i32_0 = arith.constant 0 : i32
    %c0_i32_1 = arith.constant 0 : i32
    return %c0_i32, %c0_i32_0 : i32, i32
  }
  func.func @transform_2(%arg0: i32) -> (i32, i32) {
    %c0_i32 = arith.constant 0 : i32
    %c0_i32_0 = arith.constant 0 : i32
    %c0_i32_1 = arith.constant 0 : i32
    return %c0_i32, %c0_i32_0 : i32, i32
  }
  func.func @transform_3(%arg0: i32) -> (i32, i32, i32) {
    %c0_i32 = arith.constant 0 : i32
    %c0_i32_0 = arith.constant 0 : i32
    %c0_i32_1 = arith.constant 0 : i32
    return %arg0, %c0_i32, %c0_i32_0 : i32, i32, i32
  }
}

</mosaic_0001>

<llo_original>
// kernel: last_temporal_conv_layer.1
$region0: #{last_temporal_conv_layer.1}
  #allocation0 [shape = 'u32[]', space=smem, size = 0x4, offset = 0x4, fixed_abs, tag = 'smem constant byte address 0x4 - core index']
  #allocation1 [shape = 'u32[144,128]{1,0:T(1,128)}', space=vmem, size = 0x12000, scoped, tag = 'internal scratch']
  %s0 = inlined_call_operand.vmem [shape: f32[2,12,768], index: 0, kind: input, shape index: {}]
  %s1 = inlined_call_operand.vmem [shape: f32[8,12], index: 1, kind: input, shape index: {}]
  %s2 = inlined_call_operand.vmem [shape: f32[8,1], index: 2, kind: input, shape index: {}]
  %s3 = inlined_call_operand.hbm [shape: f32[2,8,768], index: 3, kind: output, shape index: {}]
  %s4 = sld [smem:[#allocation0]]
  $region45: #{last_temporal_conv_layer.1} parent=0
    _
  %s6 = ssub.s32 1, %s4
  %s7 = scalar_select 0, %s6, %s4
  $region1: #{last_temporal_conv_layer.1} parent=0
    #allocation2 [shape = 'u8[49152]{0}', space=vmem, size = 0xc000, scoped, tag = 'output window, operand 0']
    #allocation3 [shape = 's32[2]{0}', space=sflag, size = 0x8, scoped, tag = 'scoped memory for last_temporal_conv_layer.1']
    %8 = vsyncpa [#allocation3], 0
    %s9 = scalar_lea.sflag [#allocation3], 1
    %10 = vsyncpa %s9, 0
    loop: start=0, step=1, limit=4
    $region2: #{last_temporal_conv_layer.1} parent=1 // loop_pre_header
      _
    $region3: #{last_temporal_conv_layer.1} parent=1 // loop_header
      %s12 = sphi 0, %s16
      %p13 = scmp.ge.s32.totalorder %s12, 4
      %s22 = sphi 0, %s24
      %s25 = sphi 0, %s22
      %s26 = sphi 0, %s25
      %s42 = sphi 0, %s26
      %s46 = sphi 0, %s46
      %s48 = sphi 0, %s46
      %s49 = sphi 0, %s48
      %s63 = sphi 0, %s49
      %s67 = sphi 0, %s67
      %s69 = sphi 0, %s67
      %s70 = sphi 0, %s69
      %s84 = sphi 0, %s70
      %s90 = sphi 0, %s92
      %s93 = sphi 0, %s90
      %s94 = sphi 0, %s93
      %s110 = sphi 0, %s94
    $region4: #{last_temporal_conv_layer.1} parent=1 // loop_header_branch
      %15 = sbr.rel (%p13) target = $region8
    $region5: #{last_temporal_conv_layer.1} parent=1 // loop_body
      %s17 = ssub.s32 %s12, 1
      %s18 = ssub.s32 %s12, 2
      %s19 = sadd.s32 %s12, 1
      %s20 = ssub.s32 %s12, %s19
      %p21 = scmp.eq.s32.totalorder %s20, 0
      %s23 = sadd.s32 %s22, 1
      %s24 = scalar_select %p21, %s22, %s23
      %p27 = pneg %p21
      %p28 = scmp.eq.s32.totalorder %s12, 1
      %p29 = por %p27, %p28
      %p30 = scmp.ne.s32.totalorder %s22, %s25
      %p31 = scmp.eq.s32.totalorder %s12, 0
      %p32 = por %p30, %p31
      %p33 = scmp.ne.s32.totalorder %s22, %s25
      %p34 = scmp.eq.s32.totalorder %s17, 1
      %p35 = por %p33, %p34
      %p36 = scmp.ne.s32.totalorder %s25, %s26
      %p37 = scmp.eq.s32.totalorder %s17, 0
      %p38 = por %p36, %p37
      %p39 = scmp.ne.s32.totalorder %s25, %s26
      %p40 = scmp.eq.s32.totalorder %s18, 1
      %p41 = por %p39, %p40
      %p43 = scmp.ne.s32.totalorder %s26, %s42
      %p44 = scmp.eq.s32.totalorder %s18, 0
      %p45 = por %p43, %p44
      %s47 = sadd.s32 %s46, 1
      %p50 = scmp.eq.s32.totalorder %s12, 1
      %p51 = scmp.ne.s32.totalorder %s46, %s48
      %p52 = scmp.eq.s32.totalorder %s12, 0
      %p53 = por %p51, %p52
      %p54 = scmp.ne.s32.totalorder %s46, %s48
      %p55 = scmp.eq.s32.totalorder %s17, 1
      %p56 = por %p54, %p55
      %p57 = scmp.ne.s32.totalorder %s48, %s49
      %p58 = scmp.eq.s32.totalorder %s17, 0
      %p59 = por %p57, %p58
      %p60 = scmp.ne.s32.totalorder %s48, %s49
      %p61 = scmp.eq.s32.totalorder %s18, 1
      %p62 = por %p60, %p61
      %p64 = scmp.ne.s32.totalorder %s49, %s63
      %p65 = scmp.eq.s32.totalorder %s18, 0
      %p66 = por %p64, %p65
      %s68 = sadd.s32 %s67, 1
      %p71 = scmp.eq.s32.totalorder %s12, 1
      %p72 = scmp.ne.s32.totalorder %s67, %s69
      %p73 = scmp.eq.s32.totalorder %s12, 0
      %p74 = por %p72, %p73
      %p75 = scmp.ne.s32.totalorder %s67, %s69
      %p76 = scmp.eq.s32.totalorder %s17, 1
      %p77 = por %p75, %p76
      %p78 = scmp.ne.s32.totalorder %s69, %s70
      %p79 = scmp.eq.s32.totalorder %s17, 0
      %p80 = por %p78, %p79
      %p81 = scmp.ne.s32.totalorder %s69, %s70
      %p82 = scmp.eq.s32.totalorder %s18, 1
      %p83 = por %p81, %p82
      %p85 = scmp.ne.s32.totalorder %s70, %s84
      %p86 = scmp.eq.s32.totalorder %s18, 0
      %p87 = por %p85, %p86
      %s88 = ssub.s32 %s12, %s19
      %p89 = scmp.eq.s32.totalorder %s88, 0
      %s91 = sadd.s32 %s90, 1
      %s92 = scalar_select %p89, %s90, %s91
      %p95 = pneg %p89
      %p96 = scmp.eq.s32.totalorder %s12, 1
      %p97 = por %p95, %p96
      %p98 = scmp.ne.s32.totalorder %s90, %s93
      %p99 = scmp.eq.s32.totalorder %s12, 0
      %p100 = por %p98, %p99
      %p101 = scmp.ne.s32.totalorder %s90, %s93
      %p102 = scmp.eq.s32.totalorder %s17, 1
      %p103 = por %p101, %p102
      %p104 = scmp.ne.s32.totalorder %s93, %s94
      %p105 = scmp.eq.s32.totalorder %s17, 0
      %p106 = por %p104, %p105
      %p107 = scmp.ne.s32.totalorder %s93, %s94
      %p108 = scmp.eq.s32.totalorder %s18, 1
      %p109 = por %p107, %p108
      %p111 = scmp.ne.s32.totalorder %s94, %s110
      %p112 = scmp.eq.s32.totalorder %s18, 0
      %p113 = por %p111, %p112
      %p114 = scmp.le.s32.totalorder 1, %s12
      %p115 = scmp.lt.s32.totalorder %s12, 3
      %p116 = pnand %p114, %p115
      %p117 = pneg %p116
      // Predicated region
      $region9: #{last_temporal_conv_layer.1} parent=5 // pred_check
        _
      $region10: #{last_temporal_conv_layer.1} parent=5 // pred_check_branch
        %119 = sbr.rel (%p116) target = $region12
      $region11: #{last_temporal_conv_layer.1} parent=5 // pred_region
        %s120 = ssub.s32 %s12, 1
        // Predicated region
        $region13: #{last_temporal_conv_layer.1} parent=11 // pred_check
          %p121 = pneg %p59
        $region14: #{last_temporal_conv_layer.1} parent=11 // pred_check_branch
          %123 = sbr.rel (%p121) target = $region16
        $region15: #{last_temporal_conv_layer.1} parent=11 // pred_region
          _
        $region16: #{last_temporal_conv_layer.1} parent=11 // pred_fallthru
          _
        // Predicated region
        $region17: #{last_temporal_conv_layer.1} parent=11 // pred_check
          %p124 = pneg %p80
        $region18: #{last_temporal_conv_layer.1} parent=11 // pred_check_branch
          %126 = sbr.rel (%p124) target = $region20
        $region19: #{last_temporal_conv_layer.1} parent=11 // pred_region
          _
        $region20: #{last_temporal_conv_layer.1} parent=11 // pred_fallthru
          _
      $region12: #{last_temporal_conv_layer.1} parent=5 // pred_fallthru
        _
      %p127 = scmp.lt.s32.totalorder %s12, 2
      // Predicated region
      $region21: #{last_temporal_conv_layer.1} parent=5 // pred_check
        %p128 = pneg %p127
      $region22: #{last_temporal_conv_layer.1} parent=5 // pred_check_branch
        %130 = sbr.rel (%p128) target = $region24
      $region23: #{last_temporal_conv_layer.1} parent=5 // pred_region
        // Predicated region
        $region25: #{last_temporal_conv_layer.1} parent=23 // pred_check
          %p131 = pneg %p32
        $region26: #{last_temporal_conv_layer.1} parent=23 // pred_check_branch
          %133 = sbr.rel (%p131) target = $region28
        $region27: #{last_temporal_conv_layer.1} parent=23 // pred_region
          %p134 = scmp.lt.s32.totalorder %s12, 1
          %s135 = scalar_select %p134, %s12, 1
          %s136 = smul.addr %s135, 12
          %s137 = smul.addr %s136, 8
          %s138 = scalar_lea.vmem %s0, %s137
        $region28: #{last_temporal_conv_layer.1} parent=23 // pred_fallthru
          _
      $region24: #{last_temporal_conv_layer.1} parent=5 // pred_fallthru
        _
      %p139 = scmp.le.s32.totalorder 1, %s12
      %p140 = scmp.lt.s32.totalorder %s12, 3
      %p141 = pnand %p139, %p140
      %p142 = pneg %p141
      // Predicated region
      $region29: #{last_temporal_conv_layer.1} parent=5 // pred_check
        _
      $region30: #{last_temporal_conv_layer.1} parent=5 // pred_check_branch
        %144 = sbr.rel (%p141) target = $region32
      $region31: #{last_temporal_conv_layer.1} parent=5 // pred_region
        %s145 = ssub.s32 %s12, 1
        %p146 = scmp.lt.s32.totalorder %s17, 1
        %s147 = scalar_select %p146, %s17, 1
        %s148 = smul.addr %s147, 12
        %s149 = smul.addr %s148, 8
        %s150 = scalar_lea.vmem %s0, %s149
        %p151 = pneg %p38
        %p152 = pneg %p35
        %p153 = pneg %p59
        %p154 = pneg %p56
        %p155 = pneg %p80
        %p156 = pneg %p77
        %p157 = pneg %p106
        %p158 = pneg %p103
        %s159 = sand.u32 %s93, 1
        %s160 = scalar_lea.sflag [#allocation3], %s159
        %s161 = sand.u32 %s93, 1
        %s162 = smul.addr %s161, 48
        %s163 = scalar_lea.vmem [#allocation2], %s162
        %p164 = scmp.lt.s32.totalorder %s17, 1
        %s165 = scalar_select %p164, %s17, 1
        %s166 = smul.addr %s165, 12
        %s167 = smul.addr %s166, 8
        %s168 = scalar_lea.vmem %s0, %s167
        %v169 = vld [vmem:[%s1] sm:$0xff]
        %v170 = vld [vmem:[%s2] sm:$0xff]
        %v171 = vld [vmem:[%s168] sm:$0xff]
        %v172 = vld [vmem:[%s168 + $0x8] sm:$0xff]
        %v173 = vld [vmem:[%s168 + $0x10] sm:$0xff]
        %v174 = vld [vmem:[%s168 + $0x18] sm:$0xff]
        %v175 = vld [vmem:[%s168 + $0x20] sm:$0xff]
        %v176 = vld [vmem:[%s168 + $0x28] sm:$0xff]
        %v177 = vld [vmem:[%s168 + $0x30] sm:$0xf]
        %v178 = vld [vmem:[%s168 + $0x38] sm:$0xf]
        %v179 = vld [vmem:[%s168 + $0x40] sm:$0xf]
        %v180 = vld [vmem:[%s168 + $0x48] sm:$0xf]
        %v181 = vld [vmem:[%s168 + $0x50] sm:$0xf]
        %v182 = vld [vmem:[%s168 + $0x58] sm:$0xf]
        %184 = vset.pattern.permute.xlu0 0
        %185 = vperm.xlu0 %184, %v170
        %v186 = vpop.permute.xlu0 %185
        %vm188 = vcmask 97280
        %v190 = vsel %vm188, %v169, 0
        %vm192 = vcmask 1043456
        %v194 = vsel %vm192, %v177, 0
        %v197 = vsel %vm192, %v178, 0
        %v200 = vsel %vm192, %v179, 0
        %v203 = vsel %vm192, %v180, 0
        %v206 = vsel %vm192, %v181, 0
        %v209 = vsel %vm192, %v182, 0
        %211 = vmatprep.subr.mxu0 %v172
        %212 = vmatpush1.msra.mxu0 %v171
        %213 = vmatprep.subr.mxu0 %v197
        %214 = vmatpush1.msra.mxu0 %v194
        %215 = vmatprep.subr.mxu0 0.0
        %216 = vmatpush1.msra.mxu0 0.0
        %217 = vmatprep.subr.mxu0 0.0
        %218 = vmatpush1.msra.mxu0 0.0
        %219 = vmatprep.subr.mxu0 0.0
        %220 = vmatpush1.msra.mxu0 0.0
        %221 = vmatprep.subr.mxu0 0.0
        %222 = vmatpush1.msra.mxu0 0.0
        %223 = vmatprep.subr.mxu0 0.0
        %224 = vmatpush1.msra.mxu0 0.0
        %225 = vmatprep.subr.mxu0 0.0
        %226 = vmatpush1.msra.mxu0 0.0
        %227 = vmatprep.subr.mxu0 0.0
        %228 = vmatpush1.msra.mxu0 0.0
        %229 = vmatprep.subr.mxu0 0.0
        %230 = vmatpush1.msra.mxu0 0.0
        %231 = vmatprep.subr.mxu0 0.0
        %232 = vmatpush1.msra.mxu0 0.0
        %233 = vmatprep.subr.mxu0 0.0
        %234 = vmatpush1.msra.mxu0 0.0
        %235 = vmatprep.subr.mxu0 0.0
        %236 = vmatpush1.msra.mxu0 0.0
        %237 = vmatprep.subr.mxu0 0.0
        %238 = vmatpush1.msra.mxu0 0.0
        %239 = vmatprep.subr.mxu0 0.0
        %240 = vmatpush1.msra.mxu0 0.0
        %241 = vmatprep.subr.mxu0 0.0
        %242 = vmatpush1.msra.mxu0 0.0
        %243 = vmatprep.subr.mxu0 0.0
        %244 = vmatpush1.msra.mxu0 0.0
        %245 = vmatprep.subr.mxu0 0.0
        %246 = vmatpush1.msra.mxu0 0.0
        %247 = vmatprep.subr.mxu0 0.0
        %248 = vmatpush1.msra.mxu0 0.0
        %249 = vmatprep.subr.mxu0 0.0
        %250 = vmatpush1.msra.mxu0 0.0
        %251 = vmatprep.subr.mxu0 0.0
        %252 = vmatpush1.msra.mxu0 0.0
        %253 = vmatprep.subr.mxu0 0.0
        %254 = vmatpush1.msra.mxu0 0.0
        %255 = vmatprep.subr.mxu0 0.0
        %256 = vmatpush1.msra.mxu0 0.0
        %257 = vmatprep.subr.mxu0 0.0
        %258 = vmatpush1.msra.mxu0 0.0
        %259 = vmatprep.subr.mxu0 0.0
        %260 = vmatpush1.msra.mxu0 0.0
        %261 = vmatprep.subr.mxu0 0.0
        %262 = vmatpush1.msra.mxu0 0.0
        %263 = vmatprep.subr.mxu0 0.0
        %264 = vmatpush1.msra.mxu0 0.0
        %265 = vmatprep.subr.mxu0 0.0
        %266 = vmatpush1.msra.mxu0 0.0
        %267 = vmatprep.subr.mxu0 0.0
        %268 = vmatpush1.msra.mxu0 0.0
        %269 = vmatprep.subr.mxu0 0.0
        %270 = vmatpush1.msra.mxu0 0.0
        %271 = vmatprep.subr.mxu0 0.0
        %272 = vmatpush1.msra.mxu0 0.0
        %273 = vmatprep.subr.mxu0 0.0
        %274 = vmatpush1.msra.mxu0 0.0
        %275 = vmatprep.mubr.f32.mxu0 0.0
        %276 = vmatmul.mubr.f32.gmra.mrb[0].mxu0 %v190
        %v277 = vpop.f32.mrb[0].mxu0
        %v278 = vadd.f32 %v186, %v277
        %v279 = vpop.f32.mrb[0].mxu0
        %v280 = vadd.f32 %v186, %v279
        %281 = vdwg.mxu0
        %282 = vmatprep.subr.mxu0 %v174
        %283 = vmatpush1.msra.mxu0 %v173
        %284 = vmatprep.subr.mxu0 %v203
        %285 = vmatpush1.msra.mxu0 %v200
        %286 = vmatprep.subr.mxu0 0.0
        %287 = vmatpush1.msra.mxu0 0.0
        %288 = vmatprep.subr.mxu0 0.0
        %289 = vmatpush1.msra.mxu0 0.0
        %290 = vmatprep.subr.mxu0 0.0
        %291 = vmatpush1.msra.mxu0 0.0
        %292 = vmatprep.subr.mxu0 0.0
        %293 = vmatpush1.msra.mxu0 0.0
        %294 = vmatprep.subr.mxu0 0.0
        %295 = vmatpush1.msra.mxu0 0.0
        %296 = vmatprep.subr.mxu0 0.0
        %297 = vmatpush1.msra.mxu0 0.0
        %298 = vmatprep.subr.mxu0 0.0
        %299 = vmatpush1.msra.mxu0 0.0
        %300 = vmatprep.subr.mxu0 0.0
        %301 = vmatpush1.msra.mxu0 0.0
        %302 = vmatprep.subr.mxu0 0.0
        %303 = vmatpush1.msra.mxu0 0.0
        %304 = vmatprep.subr.mxu0 0.0
        %305 = vmatpush1.msra.mxu0 0.0
        %306 = vmatprep.subr.mxu0 0.0
        %307 = vmatpush1.msra.mxu0 0.0
        %308 = vmatprep.subr.mxu0 0.0
        %309 = vmatpush1.msra.mxu0 0.0
        %310 = vmatprep.subr.mxu0 0.0
        %311 = vmatpush1.msra.mxu0 0.0
        %312 = vmatprep.subr.mxu0 0.0
        %313 = vmatpush1.msra.mxu0 0.0
        %314 = vmatprep.subr.mxu0 0.0
        %315 = vmatpush1.msra.mxu0 0.0
        %316 = vmatprep.subr.mxu0 0.0
        %317 = vmatpush1.msra.mxu0 0.0
        %318 = vmatprep.subr.mxu0 0.0
        %319 = vmatpush1.msra.mxu0 0.0
        %320 = vmatprep.subr.mxu0 0.0
        %321 = vmatpush1.msra.mxu0 0.0
        %322 = vmatprep.subr.mxu0 0.0
        %323 = vmatpush1.msra.mxu0 0.0
        %324 = vmatprep.subr.mxu0 0.0
        %325 = vmatpush1.msra.mxu0 0.0
        %326 = vmatprep.subr.mxu0 0.0
        %327 = vmatpush1.msra.mxu0 0.0
        %328 = vmatprep.subr.mxu0 0.0
        %329 = vmatpush1.msra.mxu0 0.0
        %330 = vmatprep.subr.mxu0 0.0
        %331 = vmatpush1.msra.mxu0 0.0
        %332 = vmatprep.subr.mxu0 0.0
        %333 = vmatpush1.msra.mxu0 0.0
        %334 = vmatprep.subr.mxu0 0.0
        %335 = vmatpush1.msra.mxu0 0.0
        %336 = vmatprep.subr.mxu0 0.0
        %337 = vmatpush1.msra.mxu0 0.0
        %338 = vmatprep.subr.mxu0 0.0
        %339 = vmatpush1.msra.mxu0 0.0
        %340 = vmatprep.subr.mxu0 0.0
        %341 = vmatpush1.msra.mxu0 0.0
        %342 = vmatprep.subr.mxu0 0.0
        %343 = vmatpush1.msra.mxu0 0.0
        %344 = vmatprep.subr.mxu0 0.0
        %345 = vmatpush1.msra.mxu0 0.0
        %346 = vmatprep.mubr.f32.mxu0 0.0
        %347 = vmatmul.mubr.f32.gmra.mrb[0].mxu0 %v190
        %v348 = vpop.f32.mrb[0].mxu0
        %v349 = vadd.f32 %v186, %v348
        %v350 = vpop.f32.mrb[0].mxu0
        %v351 = vadd.f32 %v186, %v350
        %352 = vdwg.mxu0
        %353 = vmatprep.subr.mxu0 %v176
        %354 = vmatpush1.msra.mxu0 %v175
        %355 = vmatprep.subr.mxu0 %v209
        %356 = vmatpush1.msra.mxu0 %v206
        %357 = vmatprep.subr.mxu0 0.0
        %358 = vmatpush1.msra.mxu0 0.0
        %359 = vmatprep.subr.mxu0 0.0
        %360 = vmatpush1.msra.mxu0 0.0
        %361 = vmatprep.subr.mxu0 0.0
        %362 = vmatpush1.msra.mxu0 0.0
        %363 = vmatprep.subr.mxu0 0.0
        %364 = vmatpush1.msra.mxu0 0.0
        %365 = vmatprep.subr.mxu0 0.0
        %366 = vmatpush1.msra.mxu0 0.0
        %367 = vmatprep.subr.mxu0 0.0
        %368 = vmatpush1.msra.mxu0 0.0
        %369 = vmatprep.subr.mxu0 0.0
        %370 = vmatpush1.msra.mxu0 0.0
        %371 = vmatprep.subr.mxu0 0.0
        %372 = vmatpush1.msra.mxu0 0.0
        %373 = vmatprep.subr.mxu0 0.0
        %374 = vmatpush1.msra.mxu0 0.0
        %375 = vmatprep.subr.mxu0 0.0
        %376 = vmatpush1.msra.mxu0 0.0
        %377 = vmatprep.subr.mxu0 0.0
        %378 = vmatpush1.msra.mxu0 0.0
        %379 = vmatprep.subr.mxu0 0.0
        %380 = vmatpush1.msra.mxu0 0.0
        %381 = vmatprep.subr.mxu0 0.0
        %382 = vmatpush1.msra.mxu0 0.0
        %383 = vmatprep.subr.mxu0 0.0
        %384 = vmatpush1.msra.mxu0 0.0
        %385 = vmatprep.subr.mxu0 0.0
        %386 = vmatpush1.msra.mxu0 0.0
        %387 = vmatprep.subr.mxu0 0.0
        %388 = vmatpush1.msra.mxu0 0.0
        %389 = vmatprep.subr.mxu0 0.0
        %390 = vmatpush1.msra.mxu0 0.0
        %391 = vmatprep.subr.mxu0 0.0
        %392 = vmatpush1.msra.mxu0 0.0
        %393 = vmatprep.subr.mxu0 0.0
        %394 = vmatpush1.msra.mxu0 0.0
        %395 = vmatprep.subr.mxu0 0.0
        %396 = vmatpush1.msra.mxu0 0.0
        %397 = vmatprep.subr.mxu0 0.0
        %398 = vmatpush1.msra.mxu0 0.0
        %399 = vmatprep.subr.mxu0 0.0
        %400 = vmatpush1.msra.mxu0 0.0
        %401 = vmatprep.subr.mxu0 0.0
        %402 = vmatpush1.msra.mxu0 0.0
        %403 = vmatprep.subr.mxu0 0.0
        %404 = vmatpush1.msra.mxu0 0.0
        %405 = vmatprep.subr.mxu0 0.0
        %406 = vmatpush1.msra.mxu0 0.0
        %407 = vmatprep.subr.mxu0 0.0
        %408 = vmatpush1.msra.mxu0 0.0
        %409 = vmatprep.subr.mxu0 0.0
        %410 = vmatpush1.msra.mxu0 0.0
        %411 = vmatprep.subr.mxu0 0.0
        %412 = vmatpush1.msra.mxu0 0.0
        %413 = vmatprep.subr.mxu0 0.0
        %414 = vmatpush1.msra.mxu0 0.0
        %415 = vmatprep.subr.mxu0 0.0
        %416 = vmatpush1.msra.mxu0 0.0
        %417 = vmatprep.mubr.f32.mxu0 0.0
        %418 = vmatmul.mubr.f32.gmra.mrb[0].mxu0 %v190
        %v419 = vpop.f32.mrb[0].mxu0
        %v420 = vadd.f32 %v186, %v419
        %v421 = vpop.f32.mrb[0].mxu0
        %v422 = vadd.f32 %v186, %v421
        %423 = vdwg.mxu0
        %v424 = vxor.u32 %v278, 2147483648
        %v425 = vxor.u32 %v280, 2147483648
        %v426 = vxor.u32 %v349, 2147483648
        %v427 = vxor.u32 %v351, 2147483648
        %v428 = vxor.u32 %v420, 2147483648
        %v429 = vxor.u32 %v422, 2147483648
        %v430 = vmul.f32 %v424, 1.442695
        %v431 = vpow.pop %v430
        %v432 = vmul.f32 %v425, 1.442695
        %v433 = vpow.pop %v432
        %v434 = vmul.f32 %v426, 1.442695
        %v435 = vpow.pop %v434
        %v436 = vmul.f32 %v427, 1.442695
        %v437 = vpow.pop %v436
        %v438 = vmul.f32 %v428, 1.442695
        %v439 = vpow.pop %v438
        %v440 = vmul.f32 %v429, 1.442695
        %v441 = vpow.pop %v440
        %v442 = vadd.f32 %v431, 1.0
        %v443 = vadd.f32 %v433, 1.0
        %v444 = vadd.f32 %v435, 1.0
        %v445 = vadd.f32 %v437, 1.0
        %v446 = vadd.f32 %v439, 1.0
        %v447 = vadd.f32 %v441, 1.0
        %v448 = vrcp.pop %v442
        %v449 = vmul.f32 1.0, %v448
        %v450 = vrcp.pop %v443
        %v451 = vmul.f32 1.0, %v450
        %v452 = vrcp.pop %v444
        %v453 = vmul.f32 1.0, %v452
        %v454 = vrcp.pop %v445
        %v455 = vmul.f32 1.0, %v454
        %v456 = vrcp.pop %v446
        %v457 = vmul.f32 1.0, %v456
        %v458 = vrcp.pop %v447
        %v459 = vmul.f32 1.0, %v458
        %460 = vst [vmem:[%s163] sm:$0xff] %v449
        %461 = vst [vmem:[%s163 + $0x8] sm:$0xff] %v451
        %462 = vst [vmem:[%s163 + $0x10] sm:$0xff] %v453
        %463 = vst [vmem:[%s163 + $0x18] sm:$0xff] %v455
        %464 = vst [vmem:[%s163 + $0x20] sm:$0xff] %v457
        %465 = vst [vmem:[%s163 + $0x28] sm:$0xff] %v459
        %s466 = sand.u32 %s93, 1
        %s467 = scalar_lea.sflag [#allocation3], %s466
        %s468 = sand.u32 %s93, 1
        %s469 = smul.addr %s468, 48
        %s470 = scalar_lea.vmem [#allocation2], %s469
        // Predicated region
        $region33: #{last_temporal_conv_layer.1} parent=31 // pred_check
          %p471 = pneg %p103
        $region34: #{last_temporal_conv_layer.1} parent=31 // pred_check_branch
          %473 = sbr.rel (%p471) target = $region36
        $region35: #{last_temporal_conv_layer.1} parent=31 // pred_region
          %s475 = ssub.s32 768, 768
          %476 = vsyncadd %s467, %s475
          %s477 = smul.addr %s17, 6
          %s478 = smul.addr %s477, 128
          %s479 = scalar_lea.hbm %s3, %s478
          %s481 = sshll.u32 %s470, 4
          %s482 = int_to_ptr.vmem [resolvable:$true] %s481
          %484 = dma.vmem_to_hbm [thread:$0]  %s482, 768, %s479, %s467
        $region36: #{last_temporal_conv_layer.1} parent=31 // pred_fallthru
          _
      $region32: #{last_temporal_conv_layer.1} parent=5 // pred_fallthru
        _
      %p485 = scmp.le.s32.totalorder 2, %s12
      // Predicated region
      $region37: #{last_temporal_conv_layer.1} parent=5 // pred_check
        %p486 = pneg %p485
      $region38: #{last_temporal_conv_layer.1} parent=5 // pred_check_branch
        %488 = sbr.rel (%p486) target = $region40
      $region39: #{last_temporal_conv_layer.1} parent=5 // pred_region
        %s489 = ssub.s32 %s12, 2
        // Predicated region
        $region41: #{last_temporal_conv_layer.1} parent=39 // pred_check
          %p490 = pneg %p109
        $region42: #{last_temporal_conv_layer.1} parent=39 // pred_check_branch
          %492 = sbr.rel (%p490) target = $region44
        $region43: #{last_temporal_conv_layer.1} parent=39 // pred_region
          %s493 = sand.u32 %s94, 1
          %s494 = scalar_lea.sflag [#allocation3], %s493
          %s495 = sand.u32 %s94, 1
          %s496 = smul.addr %s495, 48
          %s497 = scalar_lea.vmem [#allocation2], %s496
          %498 = dma.done %s494, 768
        $region44: #{last_temporal_conv_layer.1} parent=39 // pred_fallthru
          _
      $region40: #{last_temporal_conv_layer.1} parent=5 // pred_fallthru
        _
    $region6: #{last_temporal_conv_layer.1} parent=1 // loop_footer
      %s16 = sadd.s32 1, %s12
    $region7: #{last_temporal_conv_layer.1} parent=1 // loop_footer_branch
      %11 = sbr.rel target = $region3
    $region8: #{last_temporal_conv_layer.1} parent=1 // loop_exit
      _
    %499 = vsyncpa [#allocation3], 1
    %s500 = scalar_lea.sflag [#allocation3], 1
    %501 = vsyncpa %s500, 1

</llo_original>
